<compile_context>
chip_gen: v7x
topology: tpu7x:2x2x1
jax: 0.10.0
libtpu: 0.0.40
codegen_flags: <defaults>
</compile_context>

<pallas_src>
import jax
import jax.numpy as jnp
from jax.experimental import pallas as pl
from jax.experimental.pallas import tpu as pltpu

EPS = 1e-5


def _disnet_body(x, p_ref, w1_ref):
    """Shared fused forward. x: (B, D) f32 value; p_ref: (8, D) f32 ref;
    w1_ref: (D, H) bf16 ref. Returns a lane-dense (1, B) f32 row."""
    B = x.shape[0]
    H = w1_ref.shape[1]
    inv_b = 1.0 / B                                # static batch size

    # ---- bn0: one-pass batch stats, fused affine: x * s0 + t0 ----
    g0 = p_ref[0:1, :]                             # (1, D) gamma
    b0 = p_ref[1:2, :]                             # (1, D) beta
    mean0 = jnp.sum(x, axis=0, keepdims=True) * inv_b
    ex2_0 = jnp.sum(x * x, axis=0, keepdims=True) * inv_b
    var0 = jnp.maximum(ex2_0 - mean0 * mean0, 0.0)  # clamp (cancellation guard)
    s0 = g0 * jax.lax.rsqrt(var0 + EPS)
    xn = x * s0 + (b0 - mean0 * s0)                # (B, D)

    # ---- fc1 on MXU: bf16 operands, f32 accumulation ----
    fc1_b = p_ref[2:3, 0:H]                        # (1, H)
    h = jnp.dot(xn.astype(jnp.bfloat16), w1_ref[...],
                preferred_element_type=jnp.float32) + fc1_b   # (B, H) f32

    # ---- bn1: one-pass batch stats, fused affine ----
    g1 = p_ref[3:4, 0:H]
    bb1 = p_ref[4:5, 0:H]
    mean1 = jnp.sum(h, axis=0, keepdims=True) * inv_b
    ex2_1 = jnp.sum(h * h, axis=0, keepdims=True) * inv_b
    var1 = jnp.maximum(ex2_1 - mean1 * mean1, 0.0)
    s1 = g1 * jax.lax.rsqrt(var1 + EPS)

    # ---- relu ----
    hr = jnp.maximum(h * s1 + (bb1 - mean1 * s1), 0.0)        # (B, H)

    # ---- fc2 as (1,H) @ (B,H)^T -> lane-dense (1, B) row ----
    w2_row = p_ref[5:6, 0:H]                       # (1, H)
    b2 = p_ref[6:7, 0:1]                           # (1, 1)
    out_row = jax.lax.dot_general(
        w2_row, hr, (((1,), (1,)), ((), ())),
        preferred_element_type=jnp.float32) + b2   # (1, B)
    return out_row


def disnet_kernel(x_ref, p_ref, w1_ref, o_ref):
    # Whole problem fits in VMEM: gridless, everything fused, 3 input DMAs.
    o_ref[...] = _disnet_body(x_ref[...], p_ref, w1_ref).astype(o_ref.dtype)


def disnet_many_kernel(x_ref, p_ref, w1_ref, o_ref):
    # One micro-batch per grid step; params/w1 stay resident (constant index_map).
    o_ref[0] = _disnet_body(x_ref[0], p_ref, w1_ref).astype(o_ref.dtype)


def disnet_forward(x, packed_params):
    """Single forward pass. x: (B, D) f32. Returns (B, 1) f32."""
    pslab, w1_bf16 = packed_params
    B, _ = x.shape
    vmem = pl.BlockSpec(memory_space=pltpu.MemorySpace.VMEM)
    row = pl.pallas_call(
        disnet_kernel,
        out_shape=jax.ShapeDtypeStruct((1, B), jnp.float32),
        in_specs=[vmem, vmem, vmem],
        out_specs=vmem,
    )(x, pslab, w1_bf16)
    return row.reshape(B, 1)


def disnet_forward_many(xs, packed_params):
    """Many independent forward passes (serving / micro-batches) in ONE
    pallas_call: grid=(n,) amortizes launch + weight DMAs; each grid step
    computes its own batch statistics (== calling the module n times)."""
    pslab, w1_bf16 = packed_params
    n, B, D = xs.shape
    H = w1_bf16.shape[1]
    grid_spec = pltpu.PrefetchScalarGridSpec(
        num_scalar_prefetch=0,
        grid=(n,),
        in_specs=[
            pl.BlockSpec((1, B, D), lambda i: (i, 0, 0)),   # per-call x tile
            pl.BlockSpec((8, D), lambda i: (0, 0)),          # param slab: resident
            pl.BlockSpec((D, H), lambda i: (0, 0)),          # w1: resident
        ],
        out_specs=pl.BlockSpec((1, 1, B), lambda i: (i, 0, 0)),
    )
    rows = pl.pallas_call(
        disnet_many_kernel,
        out_shape=jax.ShapeDtypeStruct((n, 1, B), jnp.float32),
        grid_spec=grid_spec,
        compiler_params=pltpu.CompilerParams(
            dimension_semantics=("arbitrary",)),
    )(xs, pslab, w1_bf16)
    return rows.reshape(n, B, 1)


def make_params(key, input_dim=256, hidden=64):
    """PyTorch-equivalent f32 parameters (DisNet init)."""
    k1, k2 = jax.random.split(key)
    g0 = jnp.ones((input_dim,), jnp.float32)       # bn0 gamma
    b0 = jnp.zeros((input_dim,), jnp.float32)      # bn0 beta
    w1 = jax.random.normal(k1, (hidden, input_dim), jnp.float32) * 0.001  # (H, D)
    b1 = jnp.zeros((hidden,), jnp.float32)
    g1 = jnp.ones((hidden,), jnp.float32)          # bn1 gamma
    bb1 = jnp.zeros((hidden,), jnp.float32)        # bn1 beta
    w2 = jax.random.normal(k2, (1, hidden), jnp.float32) * 0.001          # (1, H)
    b2 = jnp.zeros((1,), jnp.float32)
    return (g0, b0, w1, b1, g1, bb1, w2, b2)


def pack_params(params):
    """One-time packing: all f32 params in one (8, D) slab (single full-tile
    DMA), fc1 weight pre-transposed + cast to bf16 as the only other param DMA.
    Assumes D is a multiple of 128 (true for the default DisNet sizes)."""
    g0, b0, w1, b1, g1, bb1, w2, b2 = params
    D = g0.shape[0]

    def row(v):
        return jnp.pad(v.astype(jnp.float32), (0, D - v.shape[0]))

    pslab = jnp.stack(
        [row(g0), row(b0), row(b1), row(g1), row(bb1), row(w2[0]), row(b2),
         jnp.zeros((D,), jnp.float32)],
        axis=0)                                                 # (8, D) f32
    w1_bf16 = jnp.asarray(w1.T, jnp.bfloat16)                   # (D, H) bf16
    return pslab, w1_bf16


def disnet_reference(x, params):
    """Pure-JAX f32 reference of the PyTorch training-mode forward."""
    g0, b0, w1, b1, g1, bb1, w2, b2 = params
    m0 = jnp.mean(x, axis=0, keepdims=True)
    v0 = jnp.mean((x - m0) ** 2, axis=0, keepdims=True)
    xn = (x - m0) / jnp.sqrt(v0 + EPS) * g0 + b0
    h = xn @ w1.T + b1
    m1 = jnp.mean(h, axis=0, keepdims=True)
    v1 = jnp.mean((h - m1) ** 2, axis=0, keepdims=True)
    hn = (h - m1) / jnp.sqrt(v1 + EPS) * g1 + bb1
    hr = jnp.maximum(hn, 0.0)
    return hr @ w2.T + b2


if __name__ == "__main__":
    key = jax.random.PRNGKey(0)
    kx, kp, kn = jax.random.split(key, 3)

    B, D, H = 8, 256, 64  # small shapes consistent with DisNet(input=D)
    x = jax.random.normal(kx, (B, D), jnp.float32)
    params = make_params(kp, input_dim=D, hidden=H)
    packed = pack_params(params)

    # Single-call path (gridless, 3 input DMAs, lane-dense output row).
    out = jax.block_until_ready(disnet_forward(x, packed))
    ref = disnet_reference(x, params)
    assert out.shape == (B, 1)
    # bf16 fc1 operands (f32 accumulate) -> relaxed tolerance.
    assert jnp.allclose(out, ref, atol=2e-3, rtol=1e-2), (out, ref)

    # Grid-amortized multi-call path (params/w1 stay resident in VMEM).
    n = 4
    xs = jax.random.normal(kn, (n, B, D), jnp.float32)
    outs = jax.block_until_ready(disnet_forward_many(xs, packed))
    refs = jnp.stack([disnet_reference(xs[i], params) for i in range(n)])
    assert outs.shape == (n, B, 1)
    assert jnp.allclose(outs, refs, atol=2e-3, rtol=1e-2), (outs, refs)

    print("KERNEL_OK")
</pallas_src>

<mosaic_0001>
module attributes {stable_mosaic.version = 11 : i64} {
  func.func @disnet_kernel(%arg0: memref<8x256xf32, #tpu.memory_space<vmem>>, %arg1: memref<8x256xf32, #tpu.memory_space<vmem>>, %arg2: memref<256x64xbf16, #tpu.memory_space<vmem>>, %arg3: memref<1x8xf32, #tpu.memory_space<vmem>>) attributes {dimension_semantics = [], scalar_prefetch = 0 : i64, scratch_operands = 0 : i64, tpu.core_type = #tpu.core_type<tc>} {
    %c0 = arith.constant 0 : index
    %c0_0 = arith.constant 0 : index
    %0 = vector.load %arg0[%c0, %c0_0] : memref<8x256xf32, #tpu.memory_space<vmem>>, vector<8x256xf32>
    %c0_1 = arith.constant 0 : index
    %c0_2 = arith.constant 0 : index
    %1 = vector.load %arg1[%c0_1, %c0_2] : memref<8x256xf32, #tpu.memory_space<vmem>>, vector<1x256xf32>
    %c1 = arith.constant 1 : index
    %c0_3 = arith.constant 0 : index
    %2 = vector.load %arg1[%c1, %c0_3] : memref<8x256xf32, #tpu.memory_space<vmem>>, vector<1x256xf32>
    %cst = arith.constant dense<0.000000e+00> : vector<256xf32>
    %3 = vector.multi_reduction <add>, %0, %cst [0] : vector<8x256xf32> to vector<256xf32>
    %4 = vector.shape_cast %3 : vector<256xf32> to vector<1x256xf32>
    %cst_4 = arith.constant 1.250000e-01 : f32
    %5 = vector.broadcast %cst_4 : f32 to vector<1x256xf32>
    %6 = arith.mulf %4, %5 : vector<1x256xf32>
    %7 = arith.mulf %0, %0 : vector<8x256xf32>
    %cst_5 = arith.constant dense<0.000000e+00> : vector<256xf32>
    %8 = vector.multi_reduction <add>, %7, %cst_5 [0] : vector<8x256xf32> to vector<256xf32>
    %9 = vector.shape_cast %8 : vector<256xf32> to vector<1x256xf32>
    %cst_6 = arith.constant 1.250000e-01 : f32
    %10 = vector.broadcast %cst_6 : f32 to vector<1x256xf32>
    %11 = arith.mulf %9, %10 : vector<1x256xf32>
    %12 = arith.mulf %6, %6 : vector<1x256xf32>
    %13 = arith.subf %11, %12 : vector<1x256xf32>
    %cst_7 = arith.constant 0.000000e+00 : f32
    %14 = vector.broadcast %cst_7 : f32 to vector<1x256xf32>
    %15 = arith.maximumf %13, %14 : vector<1x256xf32>
    %cst_8 = arith.constant 9.99999974E-6 : f32
    %16 = vector.broadcast %cst_8 : f32 to vector<1x256xf32>
    %17 = arith.addf %15, %16 : vector<1x256xf32>
    %18 = math.rsqrt %17 : vector<1x256xf32>
    %19 = arith.mulf %1, %18 : vector<1x256xf32>
    %20 = vector.broadcast %19 : vector<1x256xf32> to vector<8x256xf32>
    %21 = arith.mulf %0, %20 : vector<8x256xf32>
    %22 = arith.mulf %6, %19 : vector<1x256xf32>
    %23 = arith.subf %2, %22 : vector<1x256xf32>
    %24 = vector.broadcast %23 : vector<1x256xf32> to vector<8x256xf32>
    %25 = arith.addf %21, %24 : vector<8x256xf32>
    %c2 = arith.constant 2 : index
    %c0_9 = arith.constant 0 : index
    %26 = vector.load %arg1[%c2, %c0_9] : memref<8x256xf32, #tpu.memory_space<vmem>>, vector<1x64xf32>
    %27 = arith.truncf %25 : vector<8x256xf32> to vector<8x256xbf16>
    %c0_10 = arith.constant 0 : index
    %c0_11 = arith.constant 0 : index
    %28 = vector.load %arg2[%c0_10, %c0_11] : memref<256x64xbf16, #tpu.memory_space<vmem>>, vector<256x64xbf16>
    %cst_12 = arith.constant dense<0.000000e+00> : vector<8x64xf32>
    %29 = tpu.matmul %27, %28, %cst_12 {dimension_numbers = #tpu.dot_dimension_numbers<[1], [0], [0], [1], [0, 0, 1, 1], [], []>} : vector<8x256xbf16>, vector<256x64xbf16>, vector<8x64xf32> -> vector<8x64xf32>
    %30 = vector.broadcast %26 : vector<1x64xf32> to vector<8x64xf32>
    %31 = arith.addf %29, %30 : vector<8x64xf32>
    %c3 = arith.constant 3 : index
    %c0_13 = arith.constant 0 : index
    %32 = vector.load %arg1[%c3, %c0_13] : memref<8x256xf32, #tpu.memory_space<vmem>>, vector<1x64xf32>
    %c4 = arith.constant 4 : index
    %c0_14 = arith.constant 0 : index
    %33 = vector.load %arg1[%c4, %c0_14] : memref<8x256xf32, #tpu.memory_space<vmem>>, vector<1x64xf32>
    %cst_15 = arith.constant dense<0.000000e+00> : vector<64xf32>
    %34 = vector.multi_reduction <add>, %31, %cst_15 [0] : vector<8x64xf32> to vector<64xf32>
    %35 = vector.shape_cast %34 : vector<64xf32> to vector<1x64xf32>
    %cst_16 = arith.constant 1.250000e-01 : f32
    %36 = vector.broadcast %cst_16 : f32 to vector<1x64xf32>
    %37 = arith.mulf %35, %36 : vector<1x64xf32>
    %38 = arith.mulf %31, %31 : vector<8x64xf32>
    %cst_17 = arith.constant dense<0.000000e+00> : vector<64xf32>
    %39 = vector.multi_reduction <add>, %38, %cst_17 [0] : vector<8x64xf32> to vector<64xf32>
    %40 = vector.shape_cast %39 : vector<64xf32> to vector<1x64xf32>
    %cst_18 = arith.constant 1.250000e-01 : f32
    %41 = vector.broadcast %cst_18 : f32 to vector<1x64xf32>
    %42 = arith.mulf %40, %41 : vector<1x64xf32>
    %43 = arith.mulf %37, %37 : vector<1x64xf32>
    %44 = arith.subf %42, %43 : vector<1x64xf32>
    %cst_19 = arith.constant 0.000000e+00 : f32
    %45 = vector.broadcast %cst_19 : f32 to vector<1x64xf32>
    %46 = arith.maximumf %44, %45 : vector<1x64xf32>
    %cst_20 = arith.constant 9.99999974E-6 : f32
    %47 = vector.broadcast %cst_20 : f32 to vector<1x64xf32>
    %48 = arith.addf %46, %47 : vector<1x64xf32>
    %49 = math.rsqrt %48 : vector<1x64xf32>
    %50 = arith.mulf %32, %49 : vector<1x64xf32>
    %51 = vector.broadcast %50 : vector<1x64xf32> to vector<8x64xf32>
    %52 = arith.mulf %31, %51 : vector<8x64xf32>
    %53 = arith.mulf %37, %50 : vector<1x64xf32>
    %54 = arith.subf %33, %53 : vector<1x64xf32>
    %55 = vector.broadcast %54 : vector<1x64xf32> to vector<8x64xf32>
    %56 = arith.addf %52, %55 : vector<8x64xf32>
    %cst_21 = arith.constant 0.000000e+00 : f32
    %57 = vector.broadcast %cst_21 : f32 to vector<8x64xf32>
    %58 = arith.maximumf %56, %57 : vector<8x64xf32>
    %c5 = arith.constant 5 : index
    %c0_22 = arith.constant 0 : index
    %59 = vector.load %arg1[%c5, %c0_22] : memref<8x256xf32, #tpu.memory_space<vmem>>, vector<1x64xf32>
    %c6 = arith.constant 6 : index
    %c0_23 = arith.constant 0 : index
    %60 = vector.load %arg1[%c6, %c0_23] : memref<8x256xf32, #tpu.memory_space<vmem>>, vector<1x1xf32>
    %cst_24 = arith.constant dense<0.000000e+00> : vector<1x8xf32>
    %61 = tpu.matmul %59, %58, %cst_24 {dimension_numbers = #tpu.dot_dimension_numbers<[1], [1], [0], [0], [0, 0, 1, 0], [], []>} : vector<1x64xf32>, vector<8x64xf32>, vector<1x8xf32> -> vector<1x8xf32>
    %62 = vector.broadcast %60 : vector<1x1xf32> to vector<1x8xf32>
    %63 = arith.addf %61, %62 : vector<1x8xf32>
    %c0_25 = arith.constant 0 : index
    %c0_26 = arith.constant 0 : index
    %64 = vector.load %arg3[%c0_25, %c0_26] : memref<1x8xf32, #tpu.memory_space<vmem>>, vector<1x8xf32>
    tpu.vector_store %arg3[%c0_25, %c0_26], %63 {strides = array<i32>} : memref<1x8xf32, #tpu.memory_space<vmem>>, vector<1x8xf32>,
    return
  }
}

</mosaic_0001>

<llo_original>
// kernel: tpu_custom_call.1
$region0: #{tpu_custom_call.1}
  #allocation0 [shape = 'u32[]', space=smem, size = 0x4, offset = 0x4, fixed_abs, tag = 'smem constant byte address 0x4 - core index']
  #allocation1 [shape = 'u32[144,128]{1,0:T(1,128)}', space=vmem, size = 0x12000, scoped, tag = 'internal scratch']
  %s0 = inlined_call_operand.vmem [shape: f32[8,256], index: 0, kind: input, shape index: {}]
  %s1 = inlined_call_operand.vmem [shape: f32[8,256], index: 1, kind: input, shape index: {}]
  %s2 = inlined_call_operand.vmem [shape: bf16[256,64], index: 2, kind: input, shape index: {}]
  %s3 = inlined_call_operand.hbm [shape: f32[1,8], index: 3, kind: output, shape index: {}]
  %s4 = sld [smem:[#allocation0]]
  $region22: #{tpu_custom_call.1} parent=0
    _
  %s6 = ssub.s32 1, %s4
  %s7 = scalar_select 0, %s6, %s4
  $region1: #{tpu_custom_call.1} parent=0
    #allocation2 [shape = 'u8[512]{0}', space=vmem, size = 0x400, scoped, tag = 'output window, operand 0, single buffered']
    #allocation3 [shape = 's32[1]{0}', space=sflag, size = 0x4, scoped, tag = 'scoped memory for tpu_custom_call.1']
    %8 = vsyncpa [#allocation3], 0
    // Predicated region
    $region2: #{tpu_custom_call.1} parent=1 // pred_check
      _
    $region3: #{tpu_custom_call.1} parent=1 // pred_check_branch
      %10 = sbr.rel (0) target = $region5
    $region4: #{tpu_custom_call.1} parent=1 // pred_region
      _
    $region5: #{tpu_custom_call.1} parent=1 // pred_fallthru
      _
    // Predicated region
    $region6: #{tpu_custom_call.1} parent=1 // pred_check
      _
    $region7: #{tpu_custom_call.1} parent=1 // pred_check_branch
      %12 = sbr.rel (0) target = $region9
    $region8: #{tpu_custom_call.1} parent=1 // pred_region
      _
    $region9: #{tpu_custom_call.1} parent=1 // pred_fallthru
      _
    // Predicated region
    $region10: #{tpu_custom_call.1} parent=1 // pred_check
      _
    $region11: #{tpu_custom_call.1} parent=1 // pred_check_branch
      %14 = sbr.rel (0) target = $region13
    $region12: #{tpu_custom_call.1} parent=1 // pred_region
      _
    $region13: #{tpu_custom_call.1} parent=1 // pred_fallthru
      _
    %v16 = vld [vmem:[%s0] sm:$0xff]
    %v17 = vld [vmem:[%s0 + $0x8] sm:$0xff]
    %v18 = vld [vmem:[%s1] ss:$8 sm:$0x3]
    %s19 = scalar_lea.vmem %s1, 1
    %v20 = vld [vmem:[%s19] ss:$8 sm:$0x3]
    %v21 = vrot.slane %v16, 4
    %v22 = vadd.f32 %v16, %v21
    %v23 = vrot.slane %v22, 2
    %v24 = vadd.f32 %v22, %v23
    %v25 = vrot.slane %v24, 1
    %v26 = vadd.f32 %v24, %v25
    %v27 = vrot.slane %v17, 4
    %v28 = vadd.f32 %v17, %v27
    %v29 = vrot.slane %v28, 2
    %v30 = vadd.f32 %v28, %v29
    %v31 = vrot.slane %v30, 1
    %v32 = vadd.f32 %v30, %v31
    %v33 = vmul.f32 %v26, 0.125
    %v34 = vmul.f32 %v32, 0.125
    %v35 = vmul.f32 %v16, %v16
    %v36 = vmul.f32 %v17, %v17
    %v37 = vrot.slane %v35, 4
    %v38 = vadd.f32 %v35, %v37
    %v39 = vrot.slane %v38, 2
    %v40 = vadd.f32 %v38, %v39
    %v41 = vrot.slane %v40, 1
    %v42 = vadd.f32 %v40, %v41
    %v43 = vrot.slane %v36, 4
    %v44 = vadd.f32 %v36, %v43
    %v45 = vrot.slane %v44, 2
    %v46 = vadd.f32 %v44, %v45
    %v47 = vrot.slane %v46, 1
    %v48 = vadd.f32 %v46, %v47
    %v49 = vmul.f32 %v42, 0.125
    %v50 = vmul.f32 %v48, 0.125
    %v51 = vmul.f32 %v33, %v33
    %v52 = vmul.f32 %v34, %v34
    %v53 = vsub.f32 %v49, %v51
    %v54 = vsub.f32 %v50, %v52
    %v55 = vmax.f32 %v53, 0.0
    %v56 = vmax.f32 %v54, 0.0
    %v57 = vadd.f32 %v55, 1e-05
    %v58 = vadd.f32 %v56, 1e-05
    %v59 = vrsqrt.pop %v57
    %v60 = vrsqrt.pop %v58
    %v63 = vcombine.low %v59, %v60
    %v65 = vunpack.c.l.s4 1966171168
    %v66 = vunpack.c.0.s8 %v65
    %v67 = vlaneseq
    %v68 = vshrl.u32 %v67, 7
    %v69 = vsub.s32 %v66, %v68
    %v70 = vrot.slane %v63, %v69
    %v72 = vunpack.c.l.s4 1966171168
    %v73 = vunpack.c.0.s8 %v72
    %v74 = vlaneseq
    %v75 = vshrl.u32 %v74, 7
    %v76 = vsub.s32 %v73, %v75
    %v77 = vrot.slane %v70, %v76
    %v79 = vmul.f32 %v18, %v77
    %v81 = vlaneseq
    %v82 = vshrl.u32 %v81, 7
    %v83 = vsub.s32 0, %v82
    %v84 = vrot.slane %v79, %v83
    %v85 = vlaneseq
    %v86 = vshrl.u32 %v85, 7
    %v87 = vsub.s32 1, %v86
    %v88 = vrot.slane %v79, %v87
    %v91 = vmul.f32 %v16, %v84
    %v92 = vmul.f32 %v17, %v88
    %v93 = vmul.f32 %v33, %v84
    %v94 = vmul.f32 %v34, %v88
    %v97 = vcombine.low %v93, %v94
    %v99 = vunpack.c.l.s4 1966171168
    %v100 = vunpack.c.0.s8 %v99
    %v101 = vlaneseq
    %v102 = vshrl.u32 %v101, 7
    %v103 = vsub.s32 %v100, %v102
    %v104 = vrot.slane %v97, %v103
    %v106 = vunpack.c.l.s4 1966171168
    %v107 = vunpack.c.0.s8 %v106
    %v108 = vlaneseq
    %v109 = vshrl.u32 %v108, 7
    %v110 = vsub.s32 %v107, %v109
    %v111 = vrot.slane %v104, %v110
    %v113 = vsub.f32 %v20, %v111
    %v115 = vlaneseq
    %v116 = vshrl.u32 %v115, 7
    %v117 = vsub.s32 0, %v116
    %v118 = vrot.slane %v113, %v117
    %v119 = vlaneseq
    %v120 = vshrl.u32 %v119, 7
    %v121 = vsub.s32 1, %v120
    %v122 = vrot.slane %v113, %v121
    %v125 = vadd.f32 %v91, %v118
    %v126 = vadd.f32 %v92, %v122
    %v127 = vld [vmem:[%s1 + $0x2] ss:$0 sm:$0xff]
    %v128 = vpack.c.bf16 %v125, %v125
    %v129 = vpack.c.bf16 %v126, %v126
    %v130 = vld [vmem:[%s2] sm:$0xf]
    %v131 = vld [vmem:[%s2 + $0x4] sm:$0xf]
    %v132 = vld [vmem:[%s2 + $0x8] sm:$0xf]
    %v133 = vld [vmem:[%s2 + $0xc] sm:$0xf]
    %v134 = vld [vmem:[%s2 + $0x10] sm:$0xf]
    %v135 = vld [vmem:[%s2 + $0x14] sm:$0xf]
    %v136 = vld [vmem:[%s2 + $0x18] sm:$0xf]
    %v137 = vld [vmem:[%s2 + $0x1c] sm:$0xf]
    %v138 = vld [vmem:[%s2 + $0x20] sm:$0xf]
    %v139 = vld [vmem:[%s2 + $0x24] sm:$0xf]
    %v140 = vld [vmem:[%s2 + $0x28] sm:$0xf]
    %v141 = vld [vmem:[%s2 + $0x2c] sm:$0xf]
    %v142 = vld [vmem:[%s2 + $0x30] sm:$0xf]
    %v143 = vld [vmem:[%s2 + $0x34] sm:$0xf]
    %v144 = vld [vmem:[%s2 + $0x38] sm:$0xf]
    %v145 = vld [vmem:[%s2 + $0x3c] sm:$0xf]
    %v146 = vld [vmem:[%s2 + $0x40] sm:$0xf]
    %v147 = vld [vmem:[%s2 + $0x44] sm:$0xf]
    %v148 = vld [vmem:[%s2 + $0x48] sm:$0xf]
    %v149 = vld [vmem:[%s2 + $0x4c] sm:$0xf]
    %v150 = vld [vmem:[%s2 + $0x50] sm:$0xf]
    %v151 = vld [vmem:[%s2 + $0x54] sm:$0xf]
    %v152 = vld [vmem:[%s2 + $0x58] sm:$0xf]
    %v153 = vld [vmem:[%s2 + $0x5c] sm:$0xf]
    %v154 = vld [vmem:[%s2 + $0x60] sm:$0xf]
    %v155 = vld [vmem:[%s2 + $0x64] sm:$0xf]
    %v156 = vld [vmem:[%s2 + $0x68] sm:$0xf]
    %v157 = vld [vmem:[%s2 + $0x6c] sm:$0xf]
    %v158 = vld [vmem:[%s2 + $0x70] sm:$0xf]
    %v159 = vld [vmem:[%s2 + $0x74] sm:$0xf]
    %v160 = vld [vmem:[%s2 + $0x78] sm:$0xf]
    %v161 = vld [vmem:[%s2 + $0x7c] sm:$0xf]
    %v194 = vunpack.c.l.b16 %v130
    %v195 = vunpack.c.l.b16 %v131
    %v196 = vunpack.c.l.b16 %v132
    %v197 = vunpack.c.l.b16 %v133
    %v198 = vunpack.c.l.b16 %v134
    %v199 = vunpack.c.l.b16 %v135
    %v200 = vunpack.c.l.b16 %v136
    %v201 = vunpack.c.l.b16 %v137
    %v202 = vunpack.c.l.b16 %v138
    %v203 = vunpack.c.l.b16 %v139
    %v204 = vunpack.c.l.b16 %v140
    %v205 = vunpack.c.l.b16 %v141
    %v206 = vunpack.c.l.b16 %v142
    %v207 = vunpack.c.l.b16 %v143
    %v208 = vunpack.c.l.b16 %v144
    %v209 = vunpack.c.l.b16 %v145
    %v210 = vunpack.c.l.b16 %v146
    %v211 = vunpack.c.l.b16 %v147
    %v212 = vunpack.c.l.b16 %v148
    %v213 = vunpack.c.l.b16 %v149
    %v214 = vunpack.c.l.b16 %v150
    %v215 = vunpack.c.l.b16 %v151
    %v216 = vunpack.c.l.b16 %v152
    %v217 = vunpack.c.l.b16 %v153
    %v218 = vunpack.c.l.b16 %v154
    %v219 = vunpack.c.l.b16 %v155
    %v220 = vunpack.c.l.b16 %v156
    %v221 = vunpack.c.l.b16 %v157
    %v222 = vunpack.c.l.b16 %v158
    %v223 = vunpack.c.l.b16 %v159
    %v224 = vunpack.c.l.b16 %v160
    %v225 = vunpack.c.l.b16 %v161
    %v226 = vpack.c.b16 %v195, %v194
    %v227 = vpack.c.b16 %v197, %v196
    %v228 = vpack.c.b16 %v199, %v198
    %v229 = vpack.c.b16 %v201, %v200
    %v230 = vpack.c.b16 %v203, %v202
    %v231 = vpack.c.b16 %v205, %v204
    %v232 = vpack.c.b16 %v207, %v206
    %v233 = vpack.c.b16 %v209, %v208
    %v234 = vpack.c.b16 %v211, %v210
    %v235 = vpack.c.b16 %v213, %v212
    %v236 = vpack.c.b16 %v215, %v214
    %v237 = vpack.c.b16 %v217, %v216
    %v238 = vpack.c.b16 %v219, %v218
    %v239 = vpack.c.b16 %v221, %v220
    %v240 = vpack.c.b16 %v223, %v222
    %v241 = vpack.c.b16 %v225, %v224
    %258 = vmatprep.subr.bf16.mxu0 0
    %259 = vmatpush1.bf16.msra.mxu0 %v226
    %260 = vmatprep.subr.bf16.mxu0 0
    %261 = vmatpush1.bf16.msra.mxu0 %v227
    %262 = vmatprep.subr.bf16.mxu0 0
    %263 = vmatpush1.bf16.msra.mxu0 %v228
    %264 = vmatprep.subr.bf16.mxu0 0
    %265 = vmatpush1.bf16.msra.mxu0 %v229
    %266 = vmatprep.subr.bf16.mxu0 0
    %267 = vmatpush1.bf16.msra.mxu0 %v230
    %268 = vmatprep.subr.bf16.mxu0 0
    %269 = vmatpush1.bf16.msra.mxu0 %v231
    %270 = vmatprep.subr.bf16.mxu0 0
    %271 = vmatpush1.bf16.msra.mxu0 %v232
    %272 = vmatprep.subr.bf16.mxu0 0
    %273 = vmatpush1.bf16.msra.mxu0 %v233
    %274 = vmatprep.subr.bf16.mxu0 0
    %275 = vmatpush1.bf16.msra.mxu0 %v234
    %276 = vmatprep.subr.bf16.mxu0 0
    %277 = vmatpush1.bf16.msra.mxu0 %v235
    %278 = vmatprep.subr.bf16.mxu0 0
    %279 = vmatpush1.bf16.msra.mxu0 %v236
    %280 = vmatprep.subr.bf16.mxu0 0
    %281 = vmatpush1.bf16.msra.mxu0 %v237
    %282 = vmatprep.subr.bf16.mxu0 0
    %283 = vmatpush1.bf16.msra.mxu0 %v238
    %284 = vmatprep.subr.bf16.mxu0 0
    %285 = vmatpush1.bf16.msra.mxu0 %v239
    %286 = vmatprep.subr.bf16.mxu0 0
    %287 = vmatpush1.bf16.msra.mxu0 %v240
    %288 = vmatprep.subr.bf16.mxu0 0
    %289 = vmatpush1.bf16.msra.mxu0 %v241
    %290 = vmatprep.mubr.bf16.mxu0 %v129
    %291 = vmatmul.mubr.bf16.gmra.mrb[0].mxu0 %v128
    %v292 = vpop.f32.mrb[0].mxu0
    %v293 = vadd.f32 %v127, %v292
    %v294 = vpop.f32.mrb[0].mxu0
    %v295 = vpop.f32.mrb[0].mxu0
    %v296 = vpop.f32.mrb[0].mxu0
    %297 = vdwg.mxu0
    %v298 = vld [vmem:[%s1 + $0x3] ss:$0 sm:$0xff]
    %v299 = vld [vmem:[%s1 + $0x4] ss:$0 sm:$0xff]
    %vm300 = vcmask 523264
    %v301 = vsel %vm300, %v293, 0.0
    %v302 = vrot.slane %v301, 4
    %v303 = vadd.f32 %v301, %v302
    %v304 = vrot.slane %v303, 2
    %v305 = vadd.f32 %v303, %v304
    %v306 = vrot.slane %v305, 1
    %v307 = vadd.f32 %v305, %v306
    %v308 = vmul.f32 %v307, 0.125
    %v309 = vmul.f32 %v293, %v293
    %v310 = vsel %vm300, %v309, 0.0
    %v311 = vrot.slane %v310, 4
    %v312 = vadd.f32 %v310, %v311
    %v313 = vrot.slane %v312, 2
    %v314 = vadd.f32 %v312, %v313
    %v315 = vrot.slane %v314, 1
    %v316 = vadd.f32 %v314, %v315
    %v317 = vmul.f32 %v316, 0.125
    %v318 = vmul.f32 %v308, %v308
    %v319 = vsub.f32 %v317, %v318
    %v320 = vmax.f32 %v319, 0.0
    %v321 = vadd.f32 %v320, 1e-05
    %v322 = vrsqrt.pop %v321
    %v323 = vmul.f32 %v298, %v322
    %v324 = vmul.f32 %v293, %v323
    %v325 = vmul.f32 %v308, %v323
    %v326 = vsub.f32 %v299, %v325
    %v327 = vadd.f32 %v324, %v326
    %v328 = vmax.f32 %v327, 0.0
    %v329 = vld [vmem:[%s1 + $0x5] ss:$0 sm:$0xff]
    %v330 = vld [vmem:[%s1 + $0x6] ss:$0 sm:$0xff]
    %332 = vset.pattern.permute.xlu0 0
    %333 = vperm.xlu0 %332, %v330
    %v334 = vpop.permute.xlu0 %333
    %v337 = vsel %vm300, %v329, 0
    %v340 = vsel %vm300, %v328, 0
    %342 = vmatprep.subr.mxu0 0.0
    %343 = vmatpush1.xpose.msra.mxu0 %v340
    %344 = vmatprep.subr.mxu0 0.0
    %345 = vmatpush1.xpose.msra.mxu0 0.0
    %346 = vmatprep.subr.mxu0 0.0
    %347 = vmatpush1.xpose.msra.mxu0 0.0
    %348 = vmatprep.subr.mxu0 0.0
    %349 = vmatpush1.xpose.msra.mxu0 0.0
    %350 = vmatprep.subr.mxu0 0.0
    %351 = vmatpush1.xpose.msra.mxu0 0.0
    %352 = vmatprep.subr.mxu0 0.0
    %353 = vmatpush1.xpose.msra.mxu0 0.0
    %354 = vmatprep.subr.mxu0 0.0
    %355 = vmatpush1.xpose.msra.mxu0 0.0
    %356 = vmatprep.subr.mxu0 0.0
    %357 = vmatpush1.xpose.msra.mxu0 0.0
    %358 = vmatprep.subr.mxu0 0.0
    %359 = vmatpush1.xpose.msra.mxu0 0.0
    %360 = vmatprep.subr.mxu0 0.0
    %361 = vmatpush1.xpose.msra.mxu0 0.0
    %362 = vmatprep.subr.mxu0 0.0
    %363 = vmatpush1.xpose.msra.mxu0 0.0
    %364 = vmatprep.subr.mxu0 0.0
    %365 = vmatpush1.xpose.msra.mxu0 0.0
    %366 = vmatprep.subr.mxu0 0.0
    %367 = vmatpush1.xpose.msra.mxu0 0.0
    %368 = vmatprep.subr.mxu0 0.0
    %369 = vmatpush1.xpose.msra.mxu0 0.0
    %370 = vmatprep.subr.mxu0 0.0
    %371 = vmatpush1.xpose.msra.mxu0 0.0
    %372 = vmatprep.subr.mxu0 0.0
    %373 = vmatpush1.xpose.msra.mxu0 0.0
    %374 = vmatprep.subr.mxu0 0.0
    %375 = vmatpush1.xpose.msra.mxu0 0.0
    %376 = vmatprep.subr.mxu0 0.0
    %377 = vmatpush1.xpose.msra.mxu0 0.0
    %378 = vmatprep.subr.mxu0 0.0
    %379 = vmatpush1.xpose.msra.mxu0 0.0
    %380 = vmatprep.subr.mxu0 0.0
    %381 = vmatpush1.xpose.msra.mxu0 0.0
    %382 = vmatprep.subr.mxu0 0.0
    %383 = vmatpush1.xpose.msra.mxu0 0.0
    %384 = vmatprep.subr.mxu0 0.0
    %385 = vmatpush1.xpose.msra.mxu0 0.0
    %386 = vmatprep.subr.mxu0 0.0
    %387 = vmatpush1.xpose.msra.mxu0 0.0
    %388 = vmatprep.subr.mxu0 0.0
    %389 = vmatpush1.xpose.msra.mxu0 0.0
    %390 = vmatprep.subr.mxu0 0.0
    %391 = vmatpush1.xpose.msra.mxu0 0.0
    %392 = vmatprep.subr.mxu0 0.0
    %393 = vmatpush1.xpose.msra.mxu0 0.0
    %394 = vmatprep.subr.mxu0 0.0
    %395 = vmatpush1.xpose.msra.mxu0 0.0
    %396 = vmatprep.subr.mxu0 0.0
    %397 = vmatpush1.xpose.msra.mxu0 0.0
    %398 = vmatprep.subr.mxu0 0.0
    %399 = vmatpush1.xpose.msra.mxu0 0.0
    %400 = vmatprep.subr.mxu0 0.0
    %401 = vmatpush1.xpose.msra.mxu0 0.0
    %402 = vmatprep.subr.mxu0 0.0
    %403 = vmatpush1.xpose.msra.mxu0 0.0
    %404 = vmatprep.subr.mxu0 0.0
    %405 = vmatpush1.xpose.msra.mxu0 0.0
    %406 = vmatprep.mubr.f32.mxu0 0.0
    %407 = vmatmul.mubr.f32.gmra.mrb[0].mxu0 %v337
    %v408 = vpop.f32.mrb[0].mxu0
    %v409 = vadd.f32 %v334, %v408
    %v410 = vpop.f32.mrb[0].mxu0
    %411 = vdwg.mxu0
    %vm412 = vcmask 57344
    %413 = vst.msk [vmem:[#allocation2] sm:$0x1] %vm412, %v409
    // Predicated region
    $region14: #{tpu_custom_call.1} parent=1 // pred_check
      _
    $region15: #{tpu_custom_call.1} parent=1 // pred_check_branch
      %415 = sbr.rel (0) target = $region17
    $region16: #{tpu_custom_call.1} parent=1 // pred_region
      %s417 = ssub.s32 16, 16
      %418 = vsyncadd [#allocation3], %s417
      %s420 = sshll.u32 [#allocation2], 4
      %s421 = int_to_ptr.vmem [resolvable:$true] %s420
      %423 = dma.vmem_to_hbm [thread:$0]  %s421, 16, %s3, [#allocation3]
    $region17: #{tpu_custom_call.1} parent=1 // pred_fallthru
      _
    // Predicated region
    $region18: #{tpu_custom_call.1} parent=1 // pred_check
      _
    $region19: #{tpu_custom_call.1} parent=1 // pred_check_branch
      %425 = sbr.rel (0) target = $region21
    $region20: #{tpu_custom_call.1} parent=1 // pred_region
      %426 = dma.done [#allocation3], 16
    $region21: #{tpu_custom_call.1} parent=1 // pred_fallthru
      _
    %427 = vsyncpa [#allocation3], 1

</llo_original>
